<compile_context>
chip_gen: v6e
topology: v6e:2x2x1
jax: 0.10.0
libtpu: 0.0.40
codegen_flags: <defaults>
</compile_context>

<pallas_src>
import functools

import jax
import jax.numpy as jnp
from jax.experimental import pallas as pl
from jax.experimental.pallas import tpu as pltpu


def _round_up(x, m):
    return ((x + m - 1) // m) * m


# ----------------------------- Pallas kernel --------------------------------

def _down_kernel(x_ref, w1_ref, sh1_ref, w2_ref, sh2_ref, o_ref,
                 pad1_ref, pad2_ref, slab1_ref, slab2_ref,
                 *, NB, H2, W2, Wp, Lp, Cin, Cmid):
    # x_ref    : (NB, 4*H2, Cin, W2)   pool parities folded into dim 1
    # w1_ref   : (Cmid, 9*Ci8)         conv1 taps, BN scale folded, channel-padded
    # sh1_ref  : (Cmid, 1)             conv1 BN shift
    # w2_ref   : (Cout, 9*Cm8)         conv2 taps, BN scale folded
    # sh2_ref  : (Cout, 1)             conv2 BN shift
    # o_ref    : (NB, Cout, H2*Wp)     channels-first, lane-dense output slabs
    # pad1_ref : (Ci8, L1)             zero-padded pooled image(s), flat lanes
    # pad2_ref : (Cm8, L1)             zero-padded conv1 output, flat lanes
    # slab1/2  : (9*Ci8, NB*H2*Wp) / (9*Cm8, NB*H2*Wp)   im2col slabs
    Ci8 = pad1_ref.shape[0]
    Cm8 = pad2_ref.shape[0]
    n_img = H2 * Wp
    n_rows = NB * n_img

    # ---- 2x2 max pool: the 4 pool parities are contiguous blocks of dim 1
    xa = x_ref[...]                                          # (NB, 4*H2, Cin, W2)
    pooled = jnp.maximum(
        jnp.maximum(xa[:, 0 * H2:1 * H2], xa[:, 1 * H2:2 * H2]),
        jnp.maximum(xa[:, 2 * H2:3 * H2], xa[:, 3 * H2:4 * H2]))  # (NB, H2, Cin, W2)

    # ---- zero-init padded scratch (halo must be 0).  Per-step, NOT gated on
    #      program_id: each core has its own scratch under megacore sharding.
    pad1_ref[...] = jnp.zeros(pad1_ref.shape, pad1_ref.dtype)
    pad2_ref[...] = jnp.zeros(pad2_ref.shape, pad2_ref.dtype)

    # ---- scatter pooled rows into the channels-first padded flat buffer
    for nb in range(NB):
        for h in range(H2):
            base = nb * Lp + (1 + h) * Wp + 1
            pad1_ref[0:Cin, base:base + W2] = pooled[nb, h]   # (Cin, W2)

    # ---- conv1 im2col slab: sublanes = (tap, channel), lanes = output pixels.
    #      Ci8 is a multiple of 8 so every destination offset is 8-aligned.
    for nb in range(NB):
        for dh in range(3):
            for dw in range(3):
                k = 3 * dh + dw
                src = nb * Lp + dh * Wp + dw
                slab1_ref[k * Ci8:(k + 1) * Ci8,
                          nb * n_img:(nb + 1) * n_img] = pad1_ref[:, src:src + n_img]

    # ---- conv1 as ONE matmul (K = 9*Ci8), + BN shift, + ReLU
    acc1 = jnp.dot(w1_ref[...], slab1_ref[...],
                   preferred_element_type=jnp.float32)        # (Cmid, n_rows)
    lane = jax.lax.broadcasted_iota(jnp.int32, (1, n_rows), 1)
    valid = ((lane % Wp) < W2).astype(jnp.float32)            # in-kernel mask
    y1 = jnp.maximum(acc1 + sh1_ref[...], 0.0) * valid

    # ---- one shifted lane-dense store per image puts y1 into conv2's padded
    #      buffer (masked junk lanes land exactly on halo columns as zeros).
    for nb in range(NB):
        dst = nb * Lp + Wp + 1
        pad2_ref[0:Cmid, dst:dst + n_img] = y1[:, nb * n_img:(nb + 1) * n_img]

    # ---- conv2 im2col slab + ONE matmul (K = 9*Cm8), + shift, + ReLU
    for nb in range(NB):
        for dh in range(3):
            for dw in range(3):
                k = 3 * dh + dw
                src = nb * Lp + dh * Wp + dw
                slab2_ref[k * Cm8:(k + 1) * Cm8,
                          nb * n_img:(nb + 1) * n_img] = pad2_ref[:, src:src + n_img]

    acc2 = jnp.dot(w2_ref[...], slab2_ref[...],
                   preferred_element_type=jnp.float32)        # (Cout, n_rows)
    y2 = jnp.maximum(acc2 + sh2_ref[...], 0.0)

    for nb in range(NB):
        o_ref[nb] = y2[:, nb * n_img:(nb + 1) * n_img].astype(o_ref.dtype)


# ------------------------------ wrapper --------------------------------------

def down_forward(x_nchw, params):
    """down.forward: NCHW in, NCHW out (matches the PyTorch module)."""
    (w1, scale1, shift1), (w2, scale2, shift2) = params
    N, Cin, H, W = x_nchw.shape
    assert H % 2 == 0 and W % 2 == 0, "MaxPool2d(2) path assumes even H/W"
    Cmid = w1.shape[-1]
    Cout = w2.shape[-1]
    H2, W2 = H // 2, W // 2

    # Padded row pitch (>= W2+2 halo); Lp = per-image padded flat length.
    Wp = W2 + 8
    Lp = (H2 + 2) * Wp
    n_img = H2 * Wp                       # per-image output lanes (incl. w-junk)

    # Batch folding: keep 2 parallel grid steps when possible (v7x has 2 TCs);
    # the NB images of a step are packed along the matmul lane axis.
    n_steps = 2 if (N >= 2 and N % 2 == 0) else 1
    NB = N // n_steps
    n_rows = NB * n_img
    L1 = _round_up(NB * Lp + 2, 128)

    Ci8 = _round_up(Cin, 8)               # pad in-channels -> aligned slab writes
    Cm8 = _round_up(Cmid, 8)
    f32 = jnp.float32

    # ---- trace-time parameter prep: fold BN scale, flatten taps, pad channels
    w1f = jnp.transpose(w1.astype(f32) * scale1.reshape(1, 1, 1, Cmid), (3, 0, 1, 2))
    w1f = jnp.pad(w1f.reshape(Cmid, 9, Cin),
                  ((0, 0), (0, 0), (0, Ci8 - Cin))).reshape(Cmid, 9 * Ci8)
    w2f = jnp.transpose(w2.astype(f32) * scale2.reshape(1, 1, 1, Cout), (3, 0, 1, 2))
    w2f = jnp.pad(w2f.reshape(Cout, 9, Cmid),
                  ((0, 0), (0, 0), (0, Cm8 - Cmid))).reshape(Cout, 9 * Cm8)
    sh1 = shift1.reshape(Cmid, 1).astype(f32)
    sh2 = shift2.reshape(Cout, 1).astype(f32)

    # ---- input: expose the 2x2 pool parities as a leading block of dim 2
    #      (steps, NB, (ph,pw,H2)=4*H2, Cin, W2)
    xk = x_nchw.reshape(N, Cin, H2, 2, W2, 2)
    xk = jnp.transpose(xk, (0, 3, 5, 2, 1, 4)).reshape(n_steps, NB, 4 * H2, Cin, W2)

    kernel = functools.partial(_down_kernel, NB=NB, H2=H2, W2=W2, Wp=Wp, Lp=Lp,
                               Cin=Cin, Cmid=Cmid)

    # Per-step VMEM: input block + 2 pad buffers + 2 im2col slabs + out block
    # (~0.3 MiB here) -- far below the 32 MiB default scoped limit on all of
    # v5e/v6e/v7x, so no vmem_limit_bytes override is needed at these shapes.
    out = pl.pallas_call(
        kernel,
        out_shape=jax.ShapeDtypeStruct((n_steps, NB, Cout, n_img), x_nchw.dtype),
        grid_spec=pltpu.PrefetchScalarGridSpec(
            num_scalar_prefetch=0,
            grid=(n_steps,),
            in_specs=[
                pl.BlockSpec((pl.Squeezed(), NB, 4 * H2, Cin, W2),
                             lambda s: (s, 0, 0, 0, 0)),
                pl.BlockSpec((Cmid, 9 * Ci8), lambda s: (0, 0)),
                pl.BlockSpec((Cmid, 1), lambda s: (0, 0)),
                pl.BlockSpec((Cout, 9 * Cm8), lambda s: (0, 0)),
                pl.BlockSpec((Cout, 1), lambda s: (0, 0)),
            ],
            out_specs=pl.BlockSpec((pl.Squeezed(), NB, Cout, n_img),
                                   lambda s: (s, 0, 0, 0)),
            scratch_shapes=[
                pltpu.VMEM((Ci8, L1), f32),
                pltpu.VMEM((Cm8, L1), f32),
                pltpu.VMEM((9 * Ci8, n_rows), f32),
                pltpu.VMEM((9 * Cm8, n_rows), f32),
            ],
        ),
        compiler_params=pltpu.CompilerParams(
            dimension_semantics=("parallel",)),
    )(xk, w1f, sh1, w2f, sh2)

    # (steps, NB, Cout, H2*Wp) -> (N, Cout, H2, Wp) -> drop junk columns = NCHW
    return out.reshape(N, Cout, H2, Wp)[..., :W2]


# ------------------------------ reference -----------------------------------

def reference_forward(x_nchw, params):
    x = jnp.transpose(x_nchw, (0, 2, 3, 1))
    N, H, W, C = x.shape
    x = x.reshape(N, H // 2, 2, W // 2, 2, C).max(axis=(2, 4))
    for (w, scale, shift) in params:
        y = jax.lax.conv_general_dilated(
            x, w, window_strides=(1, 1), padding="SAME",
            dimension_numbers=("NHWC", "HWIO", "NHWC"))
        y = y * scale.reshape(1, 1, 1, -1) + shift.reshape(1, 1, 1, -1)
        x = jnp.maximum(y, 0.0)
    return jnp.transpose(x, (0, 3, 1, 2))


# ------------------------------ main -----------------------------------------

if __name__ == "__main__":
    in_ch, out_ch = 4, 8
    N, H, W = 2, 16, 16
    eps = 1e-5

    key = jax.random.PRNGKey(0)
    ks = jax.random.split(key, 11)

    # deterministic parameter init (nn.Conv2d weights as HWIO, BN as affine)
    w1 = jax.random.normal(ks[0], (3, 3, in_ch, out_ch), jnp.float32) / jnp.sqrt(9.0 * in_ch)
    w2 = jax.random.normal(ks[1], (3, 3, out_ch, out_ch), jnp.float32) / jnp.sqrt(9.0 * out_ch)

    g1 = 1.0 + 0.1 * jax.random.normal(ks[2], (out_ch,), jnp.float32)
    b1 = 0.1 * jax.random.normal(ks[3], (out_ch,), jnp.float32)
    m1 = 0.1 * jax.random.normal(ks[4], (out_ch,), jnp.float32)
    v1 = 1.0 + 0.5 * jax.random.uniform(ks[5], (out_ch,), jnp.float32)

    g2 = 1.0 + 0.1 * jax.random.normal(ks[6], (out_ch,), jnp.float32)
    b2 = 0.1 * jax.random.normal(ks[7], (out_ch,), jnp.float32)
    m2 = 0.1 * jax.random.normal(ks[8], (out_ch,), jnp.float32)
    v2 = 1.0 + 0.5 * jax.random.uniform(ks[9], (out_ch,), jnp.float32)

    scale1 = g1 / jnp.sqrt(v1 + eps)
    shift1 = b1 - m1 * scale1
    scale2 = g2 / jnp.sqrt(v2 + eps)
    shift2 = b2 - m2 * scale2

    params = [(w1, scale1, shift1), (w2, scale2, shift2)]

    x = jax.random.normal(ks[10], (N, in_ch, H, W), jnp.float32)

    out = jax.block_until_ready(down_forward(x, params))
    ref = jax.block_until_ready(reference_forward(x, params))

    assert out.shape == (N, out_ch, H // 2, W // 2), out.shape
    assert jnp.allclose(out, ref, rtol=1e-4, atol=1e-4), float(jnp.max(jnp.abs(out - ref)))

    print("KERNEL_OK")
</pallas_src>

<mosaic_0001>
module attributes {stable_mosaic.version = 11 : i64} {
  func.func @_down_kernel(%arg0: i32, %arg1: memref<1x1x32x4x8xf32, #tpu.memory_space<vmem>>, %arg2: memref<8x72xf32, #tpu.memory_space<vmem>>, %arg3: memref<8x1xf32, #tpu.memory_space<vmem>>, %arg4: memref<8x72xf32, #tpu.memory_space<vmem>>, %arg5: memref<8x1xf32, #tpu.memory_space<vmem>>, %arg6: memref<1x1x8x128xf32, #tpu.memory_space<vmem>>, %arg7: memref<8x256xf32, #tpu.memory_space<vmem>>, %arg8: memref<8x256xf32, #tpu.memory_space<vmem>>, %arg9: memref<72x128xf32, #tpu.memory_space<vmem>>, %arg10: memref<72x128xf32, #tpu.memory_space<vmem>>) attributes {dimension_semantics = [#tpu.dimension_semantics<parallel>], iteration_bounds = array<i64: 2>, scalar_prefetch = 0 : i64, scratch_operands = 4 : i64, tpu.core_type = #tpu.core_type<tc>, window_params = [{transform_indices = @transform_0, window_bounds = array<i64: 1, 1, 32, 4, 8>}, {pipeline_mode = #tpu.pipeline_mode<synchronous>, transform_indices = @transform_1, window_bounds = array<i64: 8, 72>}, {pipeline_mode = #tpu.pipeline_mode<synchronous>, transform_indices = @transform_2, window_bounds = array<i64: 8, 1>}, {pipeline_mode = #tpu.pipeline_mode<synchronous>, transform_indices = @transform_3, window_bounds = array<i64: 8, 72>}, {pipeline_mode = #tpu.pipeline_mode<synchronous>, transform_indices = @transform_4, window_bounds = array<i64: 8, 1>}, {transform_indices = @transform_5, window_bounds = array<i64: 1, 1, 8, 128>}]} {
    %c0 = arith.constant 0 : index
    %c0_0 = arith.constant 0 : index
    %c0_1 = arith.constant 0 : index
    %c0_2 = arith.constant 0 : index
    %c0_3 = arith.constant 0 : index
    %0 = vector.load %arg1[%c0, %c0_0, %c0_1, %c0_2, %c0_3] : memref<1x1x32x4x8xf32, #tpu.memory_space<vmem>>, vector<1x1x32x4x8xf32>
    %1 = vector.shape_cast %0 : vector<1x1x32x4x8xf32> to vector<1x32x4x8xf32>
    %2 = vector.extract_strided_slice %1 {offsets = [0, 0, 0, 0], sizes = [1, 8, 4, 8], strides = [1, 1, 1, 1]} : vector<1x32x4x8xf32> to vector<1x8x4x8xf32>
    %3 = vector.extract_strided_slice %1 {offsets = [0, 8, 0, 0], sizes = [1, 8, 4, 8], strides = [1, 1, 1, 1]} : vector<1x32x4x8xf32> to vector<1x8x4x8xf32>
    %4 = arith.maximumf %2, %3 : vector<1x8x4x8xf32>
    %5 = vector.extract_strided_slice %1 {offsets = [0, 16, 0, 0], sizes = [1, 8, 4, 8], strides = [1, 1, 1, 1]} : vector<1x32x4x8xf32> to vector<1x8x4x8xf32>
    %6 = vector.extract_strided_slice %1 {offsets = [0, 24, 0, 0], sizes = [1, 8, 4, 8], strides = [1, 1, 1, 1]} : vector<1x32x4x8xf32> to vector<1x8x4x8xf32>
    %7 = arith.maximumf %5, %6 : vector<1x8x4x8xf32>
    %8 = arith.maximumf %4, %7 : vector<1x8x4x8xf32>
    %cst = arith.constant 0.000000e+00 : f32
    %9 = vector.broadcast %cst : f32 to vector<8x256xf32>
    %c0_4 = arith.constant 0 : index
    %c0_5 = arith.constant 0 : index
    %10 = vector.load %arg7[%c0_4, %c0_5] : memref<8x256xf32, #tpu.memory_space<vmem>>, vector<8x256xf32>
    tpu.vector_store %arg7[%c0_4, %c0_5], %9 {strides = array<i32>} : memref<8x256xf32, #tpu.memory_space<vmem>>, vector<8x256xf32>,
    %cst_6 = arith.constant 0.000000e+00 : f32
    %11 = vector.broadcast %cst_6 : f32 to vector<8x256xf32>
    %c0_7 = arith.constant 0 : index
    %c0_8 = arith.constant 0 : index
    %12 = vector.load %arg8[%c0_7, %c0_8] : memref<8x256xf32, #tpu.memory_space<vmem>>, vector<8x256xf32>
    tpu.vector_store %arg8[%c0_7, %c0_8], %11 {strides = array<i32>} : memref<8x256xf32, #tpu.memory_space<vmem>>, vector<8x256xf32>,
    %13 = vector.extract_strided_slice %8 {offsets = [0, 0, 0, 0], sizes = [1, 1, 4, 8], strides = [1, 1, 1, 1]} : vector<1x8x4x8xf32> to vector<1x1x4x8xf32>
    %14 = vector.shape_cast %13 : vector<1x1x4x8xf32> to vector<4x8xf32>
    %c0_9 = arith.constant 0 : index
    %c17 = arith.constant 17 : index
    %15 = vector.load %arg7[%c0_9, %c17] : memref<8x256xf32, #tpu.memory_space<vmem>>, vector<4x8xf32>
    tpu.vector_store %arg7[%c0_9, %c17], %14 {strides = array<i32>} : memref<8x256xf32, #tpu.memory_space<vmem>>, vector<4x8xf32>,
    %16 = vector.extract_strided_slice %8 {offsets = [0, 1, 0, 0], sizes = [1, 1, 4, 8], strides = [1, 1, 1, 1]} : vector<1x8x4x8xf32> to vector<1x1x4x8xf32>
    %17 = vector.shape_cast %16 : vector<1x1x4x8xf32> to vector<4x8xf32>
    %c0_10 = arith.constant 0 : index
    %c33 = arith.constant 33 : index
    %18 = vector.load %arg7[%c0_10, %c33] : memref<8x256xf32, #tpu.memory_space<vmem>>, vector<4x8xf32>
    tpu.vector_store %arg7[%c0_10, %c33], %17 {strides = array<i32>} : memref<8x256xf32, #tpu.memory_space<vmem>>, vector<4x8xf32>,
    %19 = vector.extract_strided_slice %8 {offsets = [0, 2, 0, 0], sizes = [1, 1, 4, 8], strides = [1, 1, 1, 1]} : vector<1x8x4x8xf32> to vector<1x1x4x8xf32>
    %20 = vector.shape_cast %19 : vector<1x1x4x8xf32> to vector<4x8xf32>
    %c0_11 = arith.constant 0 : index
    %c49 = arith.constant 49 : index
    %21 = vector.load %arg7[%c0_11, %c49] : memref<8x256xf32, #tpu.memory_space<vmem>>, vector<4x8xf32>
    tpu.vector_store %arg7[%c0_11, %c49], %20 {strides = array<i32>} : memref<8x256xf32, #tpu.memory_space<vmem>>, vector<4x8xf32>,
    %22 = vector.extract_strided_slice %8 {offsets = [0, 3, 0, 0], sizes = [1, 1, 4, 8], strides = [1, 1, 1, 1]} : vector<1x8x4x8xf32> to vector<1x1x4x8xf32>
    %23 = vector.shape_cast %22 : vector<1x1x4x8xf32> to vector<4x8xf32>
    %c0_12 = arith.constant 0 : index
    %c65 = arith.constant 65 : index
    %24 = vector.load %arg7[%c0_12, %c65] : memref<8x256xf32, #tpu.memory_space<vmem>>, vector<4x8xf32>
    tpu.vector_store %arg7[%c0_12, %c65], %23 {strides = array<i32>} : memref<8x256xf32, #tpu.memory_space<vmem>>, vector<4x8xf32>,
    %25 = vector.extract_strided_slice %8 {offsets = [0, 4, 0, 0], sizes = [1, 1, 4, 8], strides = [1, 1, 1, 1]} : vector<1x8x4x8xf32> to vector<1x1x4x8xf32>
    %26 = vector.shape_cast %25 : vector<1x1x4x8xf32> to vector<4x8xf32>
    %c0_13 = arith.constant 0 : index
    %c81 = arith.constant 81 : index
    %27 = vector.load %arg7[%c0_13, %c81] : memref<8x256xf32, #tpu.memory_space<vmem>>, vector<4x8xf32>
    tpu.vector_store %arg7[%c0_13, %c81], %26 {strides = array<i32>} : memref<8x256xf32, #tpu.memory_space<vmem>>, vector<4x8xf32>,
    %28 = vector.extract_strided_slice %8 {offsets = [0, 5, 0, 0], sizes = [1, 1, 4, 8], strides = [1, 1, 1, 1]} : vector<1x8x4x8xf32> to vector<1x1x4x8xf32>
    %29 = vector.shape_cast %28 : vector<1x1x4x8xf32> to vector<4x8xf32>
    %c0_14 = arith.constant 0 : index
    %c97 = arith.constant 97 : index
    %30 = vector.load %arg7[%c0_14, %c97] : memref<8x256xf32, #tpu.memory_space<vmem>>, vector<4x8xf32>
    tpu.vector_store %arg7[%c0_14, %c97], %29 {strides = array<i32>} : memref<8x256xf32, #tpu.memory_space<vmem>>, vector<4x8xf32>,
    %31 = vector.extract_strided_slice %8 {offsets = [0, 6, 0, 0], sizes = [1, 1, 4, 8], strides = [1, 1, 1, 1]} : vector<1x8x4x8xf32> to vector<1x1x4x8xf32>
    %32 = vector.shape_cast %31 : vector<1x1x4x8xf32> to vector<4x8xf32>
    %c0_15 = arith.constant 0 : index
    %c113 = arith.constant 113 : index
    %33 = vector.load %arg7[%c0_15, %c113] : memref<8x256xf32, #tpu.memory_space<vmem>>, vector<4x8xf32>
    tpu.vector_store %arg7[%c0_15, %c113], %32 {strides = array<i32>} : memref<8x256xf32, #tpu.memory_space<vmem>>, vector<4x8xf32>,
    %34 = vector.extract_strided_slice %8 {offsets = [0, 7, 0, 0], sizes = [1, 1, 4, 8], strides = [1, 1, 1, 1]} : vector<1x8x4x8xf32> to vector<1x1x4x8xf32>
    %35 = vector.shape_cast %34 : vector<1x1x4x8xf32> to vector<4x8xf32>
    %c0_16 = arith.constant 0 : index
    %c129 = arith.constant 129 : index
    %36 = vector.load %arg7[%c0_16, %c129] : memref<8x256xf32, #tpu.memory_space<vmem>>, vector<4x8xf32>
    tpu.vector_store %arg7[%c0_16, %c129], %35 {strides = array<i32>} : memref<8x256xf32, #tpu.memory_space<vmem>>, vector<4x8xf32>,
    %c0_17 = arith.constant 0 : index
    %c0_18 = arith.constant 0 : index
    %37 = vector.load %arg7[%c0_17, %c0_18] : memref<8x256xf32, #tpu.memory_space<vmem>>, vector<8x128xf32>
    %c0_19 = arith.constant 0 : index
    %c0_20 = arith.constant 0 : index
    %38 = vector.load %arg9[%c0_19, %c0_20] : memref<72x128xf32, #tpu.memory_space<vmem>>, vector<8x128xf32>
    tpu.vector_store %arg9[%c0_19, %c0_20], %37 {strides = array<i32>} : memref<72x128xf32, #tpu.memory_space<vmem>>, vector<8x128xf32>,
    %c0_21 = arith.constant 0 : index
    %c1 = arith.constant 1 : index
    %39 = vector.load %arg7[%c0_21, %c1] : memref<8x256xf32, #tpu.memory_space<vmem>>, vector<8x128xf32>
    %c8 = arith.constant 8 : index
    %c0_22 = arith.constant 0 : index
    %40 = vector.load %arg9[%c8, %c0_22] : memref<72x128xf32, #tpu.memory_space<vmem>>, vector<8x128xf32>
    tpu.vector_store %arg9[%c8, %c0_22], %39 {strides = array<i32>} : memref<72x128xf32, #tpu.memory_space<vmem>>, vector<8x128xf32>,
    %c0_23 = arith.constant 0 : index
    %c2 = arith.constant 2 : index
    %41 = vector.load %arg7[%c0_23, %c2] : memref<8x256xf32, #tpu.memory_space<vmem>>, vector<8x128xf32>
    %c16 = arith.constant 16 : index
    %c0_24 = arith.constant 0 : index
    %42 = vector.load %arg9[%c16, %c0_24] : memref<72x128xf32, #tpu.memory_space<vmem>>, vector<8x128xf32>
    tpu.vector_store %arg9[%c16, %c0_24], %41 {strides = array<i32>} : memref<72x128xf32, #tpu.memory_space<vmem>>, vector<8x128xf32>,
    %c0_25 = arith.constant 0 : index
    %c16_26 = arith.constant 16 : index
    %43 = vector.load %arg7[%c0_25, %c16_26] : memref<8x256xf32, #tpu.memory_space<vmem>>, vector<8x128xf32>
    %c24 = arith.constant 24 : index
    %c0_27 = arith.constant 0 : index
    %44 = vector.load %arg9[%c24, %c0_27] : memref<72x128xf32, #tpu.memory_space<vmem>>, vector<8x128xf32>
    tpu.vector_store %arg9[%c24, %c0_27], %43 {strides = array<i32>} : memref<72x128xf32, #tpu.memory_space<vmem>>, vector<8x128xf32>,
    %c0_28 = arith.constant 0 : index
    %c17_29 = arith.constant 17 : index
    %45 = vector.load %arg7[%c0_28, %c17_29] : memref<8x256xf32, #tpu.memory_space<vmem>>, vector<8x128xf32>
    %c32 = arith.constant 32 : index
    %c0_30 = arith.constant 0 : index
    %46 = vector.load %arg9[%c32, %c0_30] : memref<72x128xf32, #tpu.memory_space<vmem>>, vector<8x128xf32>
    tpu.vector_store %arg9[%c32, %c0_30], %45 {strides = array<i32>} : memref<72x128xf32, #tpu.memory_space<vmem>>, vector<8x128xf32>,
    %c0_31 = arith.constant 0 : index
    %c18 = arith.constant 18 : index
    %47 = vector.load %arg7[%c0_31, %c18] : memref<8x256xf32, #tpu.memory_space<vmem>>, vector<8x128xf32>
    %c40 = arith.constant 40 : index
    %c0_32 = arith.constant 0 : index
    %48 = vector.load %arg9[%c40, %c0_32] : memref<72x128xf32, #tpu.memory_space<vmem>>, vector<8x128xf32>
    tpu.vector_store %arg9[%c40, %c0_32], %47 {strides = array<i32>} : memref<72x128xf32, #tpu.memory_space<vmem>>, vector<8x128xf32>,
    %c0_33 = arith.constant 0 : index
    %c32_34 = arith.constant 32 : index
    %49 = vector.load %arg7[%c0_33, %c32_34] : memref<8x256xf32, #tpu.memory_space<vmem>>, vector<8x128xf32>
    %c48 = arith.constant 48 : index
    %c0_35 = arith.constant 0 : index
    %50 = vector.load %arg9[%c48, %c0_35] : memref<72x128xf32, #tpu.memory_space<vmem>>, vector<8x128xf32>
    tpu.vector_store %arg9[%c48, %c0_35], %49 {strides = array<i32>} : memref<72x128xf32, #tpu.memory_space<vmem>>, vector<8x128xf32>,
    %c0_36 = arith.constant 0 : index
    %c33_37 = arith.constant 33 : index
    %51 = vector.load %arg7[%c0_36, %c33_37] : memref<8x256xf32, #tpu.memory_space<vmem>>, vector<8x128xf32>
    %c56 = arith.constant 56 : index
    %c0_38 = arith.constant 0 : index
    %52 = vector.load %arg9[%c56, %c0_38] : memref<72x128xf32, #tpu.memory_space<vmem>>, vector<8x128xf32>
    tpu.vector_store %arg9[%c56, %c0_38], %51 {strides = array<i32>} : memref<72x128xf32, #tpu.memory_space<vmem>>, vector<8x128xf32>,
    %c0_39 = arith.constant 0 : index
    %c34 = arith.constant 34 : index
    %53 = vector.load %arg7[%c0_39, %c34] : memref<8x256xf32, #tpu.memory_space<vmem>>, vector<8x128xf32>
    %c64 = arith.constant 64 : index
    %c0_40 = arith.constant 0 : index
    %54 = vector.load %arg9[%c64, %c0_40] : memref<72x128xf32, #tpu.memory_space<vmem>>, vector<8x128xf32>
    tpu.vector_store %arg9[%c64, %c0_40], %53 {strides = array<i32>} : memref<72x128xf32, #tpu.memory_space<vmem>>, vector<8x128xf32>,
    %c0_41 = arith.constant 0 : index
    %c0_42 = arith.constant 0 : index
    %55 = vector.load %arg2[%c0_41, %c0_42] : memref<8x72xf32, #tpu.memory_space<vmem>>, vector<8x72xf32>
    %c0_43 = arith.constant 0 : index
    %c0_44 = arith.constant 0 : index
    %56 = vector.load %arg9[%c0_43, %c0_44] : memref<72x128xf32, #tpu.memory_space<vmem>>, vector<72x128xf32>
    %cst_45 = arith.constant dense<0.000000e+00> : vector<8x128xf32>
    %57 = tpu.matmul %55, %56, %cst_45 {dimension_numbers = #tpu.dot_dimension_numbers<[1], [0], [0], [1], [0, 0, 1, 1], [], []>} : vector<8x72xf32>, vector<72x128xf32>, vector<8x128xf32> -> vector<8x128xf32>
    %58 = tpu.iota {dimensions = array<i32: 1>} : vector<1x128xi32>
    %c16_i32 = arith.constant 16 : i32
    %c0_i32 = arith.constant 0 : i32
    %59 = arith.cmpi eq, %c16_i32, %c0_i32 : i32
    %c1_i32 = arith.constant 1 : i32
    %60 = arith.select %59, %c1_i32, %c16_i32 : i32
    %61 = vector.broadcast %60 : i32 to vector<1x128xi32>
    %62 = arith.remsi %58, %61 : vector<1x128xi32>
    %c0_i32_46 = arith.constant 0 : i32
    %63 = vector.broadcast %c0_i32_46 : i32 to vector<1x128xi32>
    %64 = arith.cmpi ne, %62, %63 : vector<1x128xi32>
    %c0_i32_47 = arith.constant 0 : i32
    %65 = vector.broadcast %c0_i32_47 : i32 to vector<1x128xi32>
    %66 = arith.cmpi slt, %62, %65 : vector<1x128xi32>
    %c0_i32_48 = arith.constant 0 : i32
    %67 = arith.cmpi slt, %60, %c0_i32_48 : i32
    %68 = vector.broadcast %67 : i1 to vector<1x128xi1>
    %69 = vector.broadcast %68 : vector<1x128xi1> to vector<1x128xi1>
    %70 = arith.xori %66, %69 : vector<1x128xi1>
    %71 = arith.andi %70, %64 : vector<1x128xi1>
    %72 = vector.broadcast %60 : i32 to vector<1x128xi32>
    %73 = arith.addi %62, %72 : vector<1x128xi32>
    %74 = arith.select %71, %73, %62 : vector<1x128xi1>, vector<1x128xi32>
    %c8_i32 = arith.constant 8 : i32
    %75 = vector.broadcast %c8_i32 : i32 to vector<1x128xi32>
    %76 = arith.cmpi slt, %74, %75 : vector<1x128xi32>
    %77 = arith.extui %76 : vector<1x128xi1> to vector<1x128xi32>
    %78 = arith.sitofp %77 : vector<1x128xi32> to vector<1x128xf32>
    %c0_49 = arith.constant 0 : index
    %c0_50 = arith.constant 0 : index
    %79 = vector.load %arg3[%c0_49, %c0_50] : memref<8x1xf32, #tpu.memory_space<vmem>>, vector<8x1xf32>
    %80 = vector.broadcast %79 : vector<8x1xf32> to vector<8x128xf32>
    %81 = arith.addf %57, %80 : vector<8x128xf32>
    %cst_51 = arith.constant 0.000000e+00 : f32
    %82 = vector.broadcast %cst_51 : f32 to vector<8x128xf32>
    %83 = arith.maximumf %81, %82 : vector<8x128xf32>
    %84 = vector.broadcast %78 : vector<1x128xf32> to vector<8x128xf32>
    %85 = arith.mulf %83, %84 : vector<8x128xf32>
    %c0_52 = arith.constant 0 : index
    %c17_53 = arith.constant 17 : index
    %86 = vector.load %arg8[%c0_52, %c17_53] : memref<8x256xf32, #tpu.memory_space<vmem>>, vector<8x128xf32>
    tpu.vector_store %arg8[%c0_52, %c17_53], %85 {strides = array<i32>} : memref<8x256xf32, #tpu.memory_space<vmem>>, vector<8x128xf32>,
    %c0_54 = arith.constant 0 : index
    %c0_55 = arith.constant 0 : index
    %87 = vector.load %arg8[%c0_54, %c0_55] : memref<8x256xf32, #tpu.memory_space<vmem>>, vector<8x128xf32>
    %c0_56 = arith.constant 0 : index
    %c0_57 = arith.constant 0 : index
    %88 = vector.load %arg10[%c0_56, %c0_57] : memref<72x128xf32, #tpu.memory_space<vmem>>, vector<8x128xf32>
    tpu.vector_store %arg10[%c0_56, %c0_57], %87 {strides = array<i32>} : memref<72x128xf32, #tpu.memory_space<vmem>>, vector<8x128xf32>,
    %c0_58 = arith.constant 0 : index
    %c1_59 = arith.constant 1 : index
    %89 = vector.load %arg8[%c0_58, %c1_59] : memref<8x256xf32, #tpu.memory_space<vmem>>, vector<8x128xf32>
    %c8_60 = arith.constant 8 : index
    %c0_61 = arith.constant 0 : index
    %90 = vector.load %arg10[%c8_60, %c0_61] : memref<72x128xf32, #tpu.memory_space<vmem>>, vector<8x128xf32>
    tpu.vector_store %arg10[%c8_60, %c0_61], %89 {strides = array<i32>} : memref<72x128xf32, #tpu.memory_space<vmem>>, vector<8x128xf32>,
    %c0_62 = arith.constant 0 : index
    %c2_63 = arith.constant 2 : index
    %91 = vector.load %arg8[%c0_62, %c2_63] : memref<8x256xf32, #tpu.memory_space<vmem>>, vector<8x128xf32>
    %c16_64 = arith.constant 16 : index
    %c0_65 = arith.constant 0 : index
    %92 = vector.load %arg10[%c16_64, %c0_65] : memref<72x128xf32, #tpu.memory_space<vmem>>, vector<8x128xf32>
    tpu.vector_store %arg10[%c16_64, %c0_65], %91 {strides = array<i32>} : memref<72x128xf32, #tpu.memory_space<vmem>>, vector<8x128xf32>,
    %c0_66 = arith.constant 0 : index
    %c16_67 = arith.constant 16 : index
    %93 = vector.load %arg8[%c0_66, %c16_67] : memref<8x256xf32, #tpu.memory_space<vmem>>, vector<8x128xf32>
    %c24_68 = arith.constant 24 : index
    %c0_69 = arith.constant 0 : index
    %94 = vector.load %arg10[%c24_68, %c0_69] : memref<72x128xf32, #tpu.memory_space<vmem>>, vector<8x128xf32>
    tpu.vector_store %arg10[%c24_68, %c0_69], %93 {strides = array<i32>} : memref<72x128xf32, #tpu.memory_space<vmem>>, vector<8x128xf32>,
    %c0_70 = arith.constant 0 : index
    %c17_71 = arith.constant 17 : index
    %95 = vector.load %arg8[%c0_70, %c17_71] : memref<8x256xf32, #tpu.memory_space<vmem>>, vector<8x128xf32>
    %c32_72 = arith.constant 32 : index
    %c0_73 = arith.constant 0 : index
    %96 = vector.load %arg10[%c32_72, %c0_73] : memref<72x128xf32, #tpu.memory_space<vmem>>, vector<8x128xf32>
    tpu.vector_store %arg10[%c32_72, %c0_73], %95 {strides = array<i32>} : memref<72x128xf32, #tpu.memory_space<vmem>>, vector<8x128xf32>,
    %c0_74 = arith.constant 0 : index
    %c18_75 = arith.constant 18 : index
    %97 = vector.load %arg8[%c0_74, %c18_75] : memref<8x256xf32, #tpu.memory_space<vmem>>, vector<8x128xf32>
    %c40_76 = arith.constant 40 : index
    %c0_77 = arith.constant 0 : index
    %98 = vector.load %arg10[%c40_76, %c0_77] : memref<72x128xf32, #tpu.memory_space<vmem>>, vector<8x128xf32>
    tpu.vector_store %arg10[%c40_76, %c0_77], %97 {strides = array<i32>} : memref<72x128xf32, #tpu.memory_space<vmem>>, vector<8x128xf32>,
    %c0_78 = arith.constant 0 : index
    %c32_79 = arith.constant 32 : index
    %99 = vector.load %arg8[%c0_78, %c32_79] : memref<8x256xf32, #tpu.memory_space<vmem>>, vector<8x128xf32>
    %c48_80 = arith.constant 48 : index
    %c0_81 = arith.constant 0 : index
    %100 = vector.load %arg10[%c48_80, %c0_81] : memref<72x128xf32, #tpu.memory_space<vmem>>, vector<8x128xf32>
    tpu.vector_store %arg10[%c48_80, %c0_81], %99 {strides = array<i32>} : memref<72x128xf32, #tpu.memory_space<vmem>>, vector<8x128xf32>,
    %c0_82 = arith.constant 0 : index
    %c33_83 = arith.constant 33 : index
    %101 = vector.load %arg8[%c0_82, %c33_83] : memref<8x256xf32, #tpu.memory_space<vmem>>, vector<8x128xf32>
    %c56_84 = arith.constant 56 : index
    %c0_85 = arith.constant 0 : index
    %102 = vector.load %arg10[%c56_84, %c0_85] : memref<72x128xf32, #tpu.memory_space<vmem>>, vector<8x128xf32>
    tpu.vector_store %arg10[%c56_84, %c0_85], %101 {strides = array<i32>} : memref<72x128xf32, #tpu.memory_space<vmem>>, vector<8x128xf32>,
    %c0_86 = arith.constant 0 : index
    %c34_87 = arith.constant 34 : index
    %103 = vector.load %arg8[%c0_86, %c34_87] : memref<8x256xf32, #tpu.memory_space<vmem>>, vector<8x128xf32>
    %c64_88 = arith.constant 64 : index
    %c0_89 = arith.constant 0 : index
    %104 = vector.load %arg10[%c64_88, %c0_89] : memref<72x128xf32, #tpu.memory_space<vmem>>, vector<8x128xf32>
    tpu.vector_store %arg10[%c64_88, %c0_89], %103 {strides = array<i32>} : memref<72x128xf32, #tpu.memory_space<vmem>>, vector<8x128xf32>,
    %c0_90 = arith.constant 0 : index
    %c0_91 = arith.constant 0 : index
    %105 = vector.load %arg4[%c0_90, %c0_91] : memref<8x72xf32, #tpu.memory_space<vmem>>, vector<8x72xf32>
    %c0_92 = arith.constant 0 : index
    %c0_93 = arith.constant 0 : index
    %106 = vector.load %arg10[%c0_92, %c0_93] : memref<72x128xf32, #tpu.memory_space<vmem>>, vector<72x128xf32>
    %cst_94 = arith.constant dense<0.000000e+00> : vector<8x128xf32>
    %107 = tpu.matmul %105, %106, %cst_94 {dimension_numbers = #tpu.dot_dimension_numbers<[1], [0], [0], [1], [0, 0, 1, 1], [], []>} : vector<8x72xf32>, vector<72x128xf32>, vector<8x128xf32> -> vector<8x128xf32>
    %c0_95 = arith.constant 0 : index
    %c0_96 = arith.constant 0 : index
    %108 = vector.load %arg5[%c0_95, %c0_96] : memref<8x1xf32, #tpu.memory_space<vmem>>, vector<8x1xf32>
    %109 = vector.broadcast %108 : vector<8x1xf32> to vector<8x128xf32>
    %110 = arith.addf %107, %109 : vector<8x128xf32>
    %cst_97 = arith.constant 0.000000e+00 : f32
    %111 = vector.broadcast %cst_97 : f32 to vector<8x128xf32>
    %112 = arith.maximumf %110, %111 : vector<8x128xf32>
    %c0_98 = arith.constant 0 : index
    %c0_99 = arith.constant 0 : index
    %c0_100 = arith.constant 0 : index
    %c0_101 = arith.constant 0 : index
    %113 = vector.load %arg6[%c0_98, %c0_99, %c0_100, %c0_101] : memref<1x1x8x128xf32, #tpu.memory_space<vmem>>, vector<1x1x8x128xf32>
    %114 = vector.shape_cast %113 : vector<1x1x8x128xf32> to vector<8x128xf32>
    %115 = vector.shape_cast %112 : vector<8x128xf32> to vector<1x1x8x128xf32>
    tpu.vector_store %arg6[%c0_98, %c0_99, %c0_100, %c0_101], %115 {strides = array<i32>} : memref<1x1x8x128xf32, #tpu.memory_space<vmem>>, vector<1x1x8x128xf32>,
    return
  }
  func.func @transform_0(%arg0: i32) -> (i32, i32, i32, i32, i32) {
    %c0_i32 = arith.constant 0 : i32
    %c0_i32_0 = arith.constant 0 : i32
    %c0_i32_1 = arith.constant 0 : i32
    %c0_i32_2 = arith.constant 0 : i32
    %c0_i32_3 = arith.constant 0 : i32
    return %arg0, %c0_i32, %c0_i32_0, %c0_i32_1, %c0_i32_2 : i32, i32, i32, i32, i32
  }
  func.func @transform_1(%arg0: i32) -> (i32, i32) {
    %c0_i32 = arith.constant 0 : i32
    %c0_i32_0 = arith.constant 0 : i32
    %c0_i32_1 = arith.constant 0 : i32
    return %c0_i32, %c0_i32_0 : i32, i32
  }
  func.func @transform_2(%arg0: i32) -> (i32, i32) {
    %c0_i32 = arith.constant 0 : i32
    %c0_i32_0 = arith.constant 0 : i32
    %c0_i32_1 = arith.constant 0 : i32
    return %c0_i32, %c0_i32_0 : i32, i32
  }
  func.func @transform_3(%arg0: i32) -> (i32, i32) {
    %c0_i32 = arith.constant 0 : i32
    %c0_i32_0 = arith.constant 0 : i32
    %c0_i32_1 = arith.constant 0 : i32
    return %c0_i32, %c0_i32_0 : i32, i32
  }
  func.func @transform_4(%arg0: i32) -> (i32, i32) {
    %c0_i32 = arith.constant 0 : i32
    %c0_i32_0 = arith.constant 0 : i32
    %c0_i32_1 = arith.constant 0 : i32
    return %c0_i32, %c0_i32_0 : i32, i32
  }
  func.func @transform_5(%arg0: i32) -> (i32, i32, i32, i32) {
    %c0_i32 = arith.constant 0 : i32
    %c0_i32_0 = arith.constant 0 : i32
    %c0_i32_1 = arith.constant 0 : i32
    %c0_i32_2 = arith.constant 0 : i32
    return %arg0, %c0_i32, %c0_i32_0, %c0_i32_1 : i32, i32, i32, i32
  }
}

</mosaic_0001>

<llo_original>
// kernel: tpu_custom_call.1
$region0: #{tpu_custom_call.1}
  #allocation0 [shape = 'u32[]', space=smem, size = 0x4, offset = 0x4, fixed_abs, tag = 'smem constant byte address 0x4 - core index']
  #allocation1 [shape = 'u32[144,128]{1,0:T(1,128)}', space=vmem, size = 0x12000, scoped, tag = 'internal scratch']
  #allocation2 [shape = 'f32[8,256]{1,0:T(8,128)}', space=vmem, size = 0x2000, scoped, tag = 'scratch operand']
  #allocation3 [shape = 'f32[8,256]{1,0:T(8,128)}', space=vmem, size = 0x2000, scoped, tag = 'scratch operand']
  #allocation4 [shape = 'f32[72,128]{1,0:T(8,128)}', space=vmem, size = 0x9000, scoped, tag = 'scratch operand']
  #allocation5 [shape = 'f32[72,128]{1,0:T(8,128)}', space=vmem, size = 0x9000, scoped, tag = 'scratch operand']
  %s0 = inlined_call_operand.vmem [shape: f32[2,1,32,4,8], index: 0, kind: input, shape index: {}]
  %s1 = inlined_call_operand.vmem [shape: f32[8,72], index: 1, kind: input, shape index: {}]
  %s2 = inlined_call_operand.vmem [shape: f32[8,1], index: 2, kind: input, shape index: {}]
  %s3 = inlined_call_operand.vmem [shape: f32[8,72], index: 3, kind: input, shape index: {}]
  %s4 = inlined_call_operand.vmem [shape: f32[8,1], index: 4, kind: input, shape index: {}]
  %s5 = inlined_call_operand.hbm [shape: f32[2,1,8,128], index: 5, kind: output, shape index: {}]
  %s6 = sld [smem:[#allocation0]]
  $region53: #{tpu_custom_call.1} parent=0
    _
  %s8 = ssub.s32 1, %s6
  %s9 = scalar_select 0, %s8, %s6
  $region1: #{tpu_custom_call.1} parent=0
    #allocation6 [shape = 'u8[8192]{0}', space=vmem, size = 0x2000, scoped, tag = 'output window, operand 0']
    #allocation7 [shape = 's32[2]{0}', space=sflag, size = 0x8, scoped, tag = 'scoped memory for tpu_custom_call.1']
    %10 = vsyncpa [#allocation7], 0
    %s11 = scalar_lea.sflag [#allocation7], 1
    %12 = vsyncpa %s11, 0
    loop: start=0, step=1, limit=4
    $region2: #{tpu_custom_call.1} parent=1 // loop_pre_header
      _
    $region3: #{tpu_custom_call.1} parent=1 // loop_header
      %s14 = sphi 0, %s18
      %p15 = scmp.ge.s32.totalorder %s14, 4
      %s24 = sphi 0, %s26
      %s27 = sphi 0, %s24
      %s28 = sphi 0, %s27
      %s44 = sphi 0, %s28
      %s48 = sphi 0, %s48
      %s50 = sphi 0, %s48
      %s51 = sphi 0, %s50
      %s65 = sphi 0, %s51
      %s69 = sphi 0, %s69
      %s71 = sphi 0, %s69
      %s72 = sphi 0, %s71
      %s86 = sphi 0, %s72
      %s90 = sphi 0, %s90
      %s92 = sphi 0, %s90
      %s93 = sphi 0, %s92
      %s107 = sphi 0, %s93
      %s111 = sphi 0, %s111
      %s113 = sphi 0, %s111
      %s114 = sphi 0, %s113
      %s128 = sphi 0, %s114
      %s134 = sphi 0, %s136
      %s137 = sphi 0, %s134
      %s138 = sphi 0, %s137
      %s154 = sphi 0, %s138
    $region4: #{tpu_custom_call.1} parent=1 // loop_header_branch
      %17 = sbr.rel (%p15) target = $region8
    $region5: #{tpu_custom_call.1} parent=1 // loop_body
      %s19 = ssub.s32 %s14, 1
      %s20 = ssub.s32 %s14, 2
      %s21 = sadd.s32 %s14, 1
      %s22 = ssub.s32 %s14, %s21
      %p23 = scmp.eq.s32.totalorder %s22, 0
      %s25 = sadd.s32 %s24, 1
      %s26 = scalar_select %p23, %s24, %s25
      %p29 = pneg %p23
      %p30 = scmp.eq.s32.totalorder %s14, 1
      %p31 = por %p29, %p30
      %p32 = scmp.ne.s32.totalorder %s24, %s27
      %p33 = scmp.eq.s32.totalorder %s14, 0
      %p34 = por %p32, %p33
      %p35 = scmp.ne.s32.totalorder %s24, %s27
      %p36 = scmp.eq.s32.totalorder %s19, 1
      %p37 = por %p35, %p36
      %p38 = scmp.ne.s32.totalorder %s27, %s28
      %p39 = scmp.eq.s32.totalorder %s19, 0
      %p40 = por %p38, %p39
      %p41 = scmp.ne.s32.totalorder %s27, %s28
      %p42 = scmp.eq.s32.totalorder %s20, 1
      %p43 = por %p41, %p42
      %p45 = scmp.ne.s32.totalorder %s28, %s44
      %p46 = scmp.eq.s32.totalorder %s20, 0
      %p47 = por %p45, %p46
      %s49 = sadd.s32 %s48, 1
      %p52 = scmp.eq.s32.totalorder %s14, 1
      %p53 = scmp.ne.s32.totalorder %s48, %s50
      %p54 = scmp.eq.s32.totalorder %s14, 0
      %p55 = por %p53, %p54
      %p56 = scmp.ne.s32.totalorder %s48, %s50
      %p57 = scmp.eq.s32.totalorder %s19, 1
      %p58 = por %p56, %p57
      %p59 = scmp.ne.s32.totalorder %s50, %s51
      %p60 = scmp.eq.s32.totalorder %s19, 0
      %p61 = por %p59, %p60
      %p62 = scmp.ne.s32.totalorder %s50, %s51
      %p63 = scmp.eq.s32.totalorder %s20, 1
      %p64 = por %p62, %p63
      %p66 = scmp.ne.s32.totalorder %s51, %s65
      %p67 = scmp.eq.s32.totalorder %s20, 0
      %p68 = por %p66, %p67
      %s70 = sadd.s32 %s69, 1
      %p73 = scmp.eq.s32.totalorder %s14, 1
      %p74 = scmp.ne.s32.totalorder %s69, %s71
      %p75 = scmp.eq.s32.totalorder %s14, 0
      %p76 = por %p74, %p75
      %p77 = scmp.ne.s32.totalorder %s69, %s71
      %p78 = scmp.eq.s32.totalorder %s19, 1
      %p79 = por %p77, %p78
      %p80 = scmp.ne.s32.totalorder %s71, %s72
      %p81 = scmp.eq.s32.totalorder %s19, 0
      %p82 = por %p80, %p81
      %p83 = scmp.ne.s32.totalorder %s71, %s72
      %p84 = scmp.eq.s32.totalorder %s20, 1
      %p85 = por %p83, %p84
      %p87 = scmp.ne.s32.totalorder %s72, %s86
      %p88 = scmp.eq.s32.totalorder %s20, 0
      %p89 = por %p87, %p88
      %s91 = sadd.s32 %s90, 1
      %p94 = scmp.eq.s32.totalorder %s14, 1
      %p95 = scmp.ne.s32.totalorder %s90, %s92
      %p96 = scmp.eq.s32.totalorder %s14, 0
      %p97 = por %p95, %p96
      %p98 = scmp.ne.s32.totalorder %s90, %s92
      %p99 = scmp.eq.s32.totalorder %s19, 1
      %p100 = por %p98, %p99
      %p101 = scmp.ne.s32.totalorder %s92, %s93
      %p102 = scmp.eq.s32.totalorder %s19, 0
      %p103 = por %p101, %p102
      %p104 = scmp.ne.s32.totalorder %s92, %s93
      %p105 = scmp.eq.s32.totalorder %s20, 1
      %p106 = por %p104, %p105
      %p108 = scmp.ne.s32.totalorder %s93, %s107
      %p109 = scmp.eq.s32.totalorder %s20, 0
      %p110 = por %p108, %p109
      %s112 = sadd.s32 %s111, 1
      %p115 = scmp.eq.s32.totalorder %s14, 1
      %p116 = scmp.ne.s32.totalorder %s111, %s113
      %p117 = scmp.eq.s32.totalorder %s14, 0
      %p118 = por %p116, %p117
      %p119 = scmp.ne.s32.totalorder %s111, %s113
      %p120 = scmp.eq.s32.totalorder %s19, 1
      %p121 = por %p119, %p120
      %p122 = scmp.ne.s32.totalorder %s113, %s114
      %p123 = scmp.eq.s32.totalorder %s19, 0
      %p124 = por %p122, %p123
      %p125 = scmp.ne.s32.totalorder %s113, %s114
      %p126 = scmp.eq.s32.totalorder %s20, 1
      %p127 = por %p125, %p126
      %p129 = scmp.ne.s32.totalorder %s114, %s128
      %p130 = scmp.eq.s32.totalorder %s20, 0
      %p131 = por %p129, %p130
      %s132 = ssub.s32 %s14, %s21
      %p133 = scmp.eq.s32.totalorder %s132, 0
      %s135 = sadd.s32 %s134, 1
      %s136 = scalar_select %p133, %s134, %s135
      %p139 = pneg %p133
      %p140 = scmp.eq.s32.totalorder %s14, 1
      %p141 = por %p139, %p140
      %p142 = scmp.ne.s32.totalorder %s134, %s137
      %p143 = scmp.eq.s32.totalorder %s14, 0
      %p144 = por %p142, %p143
      %p145 = scmp.ne.s32.totalorder %s134, %s137
      %p146 = scmp.eq.s32.totalorder %s19, 1
      %p147 = por %p145, %p146
      %p148 = scmp.ne.s32.totalorder %s137, %s138
      %p149 = scmp.eq.s32.totalorder %s19, 0
      %p150 = por %p148, %p149
      %p151 = scmp.ne.s32.totalorder %s137, %s138
      %p152 = scmp.eq.s32.totalorder %s20, 1
      %p153 = por %p151, %p152
      %p155 = scmp.ne.s32.totalorder %s138, %s154
      %p156 = scmp.eq.s32.totalorder %s20, 0
      %p157 = por %p155, %p156
      %p158 = scmp.le.s32.totalorder 1, %s14
      %p159 = scmp.lt.s32.totalorder %s14, 3
      %p160 = pnand %p158, %p159
      %p161 = pneg %p160
      // Predicated region
      $region9: #{tpu_custom_call.1} parent=5 // pred_check
        _
      $region10: #{tpu_custom_call.1} parent=5 // pred_check_branch
        %163 = sbr.rel (%p160) target = $region12
      $region11: #{tpu_custom_call.1} parent=5 // pred_region
        %s164 = ssub.s32 %s14, 1
        // Predicated region
        $region13: #{tpu_custom_call.1} parent=11 // pred_check
          %p165 = pneg %p61
        $region14: #{tpu_custom_call.1} parent=11 // pred_check_branch
          %167 = sbr.rel (%p165) target = $region16
        $region15: #{tpu_custom_call.1} parent=11 // pred_region
          _
        $region16: #{tpu_custom_call.1} parent=11 // pred_fallthru
          _
        // Predicated region
        $region17: #{tpu_custom_call.1} parent=11 // pred_check
          %p168 = pneg %p82
        $region18: #{tpu_custom_call.1} parent=11 // pred_check_branch
          %170 = sbr.rel (%p168) target = $region20
        $region19: #{tpu_custom_call.1} parent=11 // pred_region
          _
        $region20: #{tpu_custom_call.1} parent=11 // pred_fallthru
          _
        // Predicated region
        $region21: #{tpu_custom_call.1} parent=11 // pred_check
          %p171 = pneg %p103
        $region22: #{tpu_custom_call.1} parent=11 // pred_check_branch
          %173 = sbr.rel (%p171) target = $region24
        $region23: #{tpu_custom_call.1} parent=11 // pred_region
          _
        $region24: #{tpu_custom_call.1} parent=11 // pred_fallthru
          _
        // Predicated region
        $region25: #{tpu_custom_call.1} parent=11 // pred_check
          %p174 = pneg %p124
        $region26: #{tpu_custom_call.1} parent=11 // pred_check_branch
          %176 = sbr.rel (%p174) target = $region28
        $region27: #{tpu_custom_call.1} parent=11 // pred_region
          _
        $region28: #{tpu_custom_call.1} parent=11 // pred_fallthru
          _
      $region12: #{tpu_custom_call.1} parent=5 // pred_fallthru
        _
      %p177 = scmp.lt.s32.totalorder %s14, 2
      // Predicated region
      $region29: #{tpu_custom_call.1} parent=5 // pred_check
        %p178 = pneg %p177
      $region30: #{tpu_custom_call.1} parent=5 // pred_check_branch
        %180 = sbr.rel (%p178) target = $region32
      $region31: #{tpu_custom_call.1} parent=5 // pred_region
        // Predicated region
        $region33: #{tpu_custom_call.1} parent=31 // pred_check
          %p181 = pneg %p34
        $region34: #{tpu_custom_call.1} parent=31 // pred_check_branch
          %183 = sbr.rel (%p181) target = $region36
        $region35: #{tpu_custom_call.1} parent=31 // pred_region
          %p184 = scmp.lt.s32.totalorder %s14, 1
          %s185 = scalar_select %p184, %s14, 1
          %s186 = smul.addr %s185, 32
          %s187 = smul.addr %s186, 4
          %s188 = scalar_lea.vmem %s0, %s187
        $region36: #{tpu_custom_call.1} parent=31 // pred_fallthru
          _
      $region32: #{tpu_custom_call.1} parent=5 // pred_fallthru
        _
      %p189 = scmp.le.s32.totalorder 1, %s14
      %p190 = scmp.lt.s32.totalorder %s14, 3
      %p191 = pnand %p189, %p190
      %p192 = pneg %p191
      // Predicated region
      $region37: #{tpu_custom_call.1} parent=5 // pred_check
        _
      $region38: #{tpu_custom_call.1} parent=5 // pred_check_branch
        %194 = sbr.rel (%p191) target = $region40
      $region39: #{tpu_custom_call.1} parent=5 // pred_region
        %s195 = ssub.s32 %s14, 1
        %p196 = scmp.lt.s32.totalorder %s19, 1
        %s197 = scalar_select %p196, %s19, 1
        %s198 = smul.addr %s197, 32
        %s199 = smul.addr %s198, 4
        %s200 = scalar_lea.vmem %s0, %s199
        %p201 = pneg %p40
        %p202 = pneg %p37
        %p203 = pneg %p61
        %p204 = pneg %p58
        %p205 = pneg %p82
        %p206 = pneg %p79
        %p207 = pneg %p103
        %p208 = pneg %p100
        %p209 = pneg %p124
        %p210 = pneg %p121
        %p211 = pneg %p150
        %p212 = pneg %p147
        %s213 = sand.u32 %s137, 1
        %s214 = scalar_lea.sflag [#allocation7], %s213
        %s215 = sand.u32 %s137, 1
        %s216 = smul.addr %s215, 8
        %s217 = scalar_lea.vmem [#allocation6], %s216
        %p218 = scmp.lt.s32.totalorder %s19, 1
        %s219 = scalar_select %p218, %s19, 1
        %s220 = smul.addr %s219, 32
        %s221 = smul.addr %s220, 4
        %s222 = scalar_lea.vmem %s0, %s221
        %v223 = vld [vmem:[%s222] sm:$0xf]
        %v224 = vld [vmem:[%s222 + $0x4] sm:$0xf]
        %v225 = vld [vmem:[%s222 + $0x8] sm:$0xf]
        %v226 = vld [vmem:[%s222 + $0xc] sm:$0xf]
        %v227 = vld [vmem:[%s222 + $0x10] sm:$0xf]
        %v228 = vld [vmem:[%s222 + $0x14] sm:$0xf]
        %v229 = vld [vmem:[%s222 + $0x18] sm:$0xf]
        %v230 = vld [vmem:[%s222 + $0x1c] sm:$0xf]
        %v231 = vld [vmem:[%s222 + $0x20] sm:$0xf]
        %v232 = vld [vmem:[%s222 + $0x24] sm:$0xf]
        %v233 = vld [vmem:[%s222 + $0x28] sm:$0xf]
        %v234 = vld [vmem:[%s222 + $0x2c] sm:$0xf]
        %v235 = vld [vmem:[%s222 + $0x30] sm:$0xf]
        %v236 = vld [vmem:[%s222 + $0x34] sm:$0xf]
        %v237 = vld [vmem:[%s222 + $0x38] sm:$0xf]
        %v238 = vld [vmem:[%s222 + $0x3c] sm:$0xf]
        %v239 = vld [vmem:[%s222 + $0x40] sm:$0xf]
        %v240 = vld [vmem:[%s222 + $0x44] sm:$0xf]
        %v241 = vld [vmem:[%s222 + $0x48] sm:$0xf]
        %v242 = vld [vmem:[%s222 + $0x4c] sm:$0xf]
        %v243 = vld [vmem:[%s222 + $0x50] sm:$0xf]
        %v244 = vld [vmem:[%s222 + $0x54] sm:$0xf]
        %v245 = vld [vmem:[%s222 + $0x58] sm:$0xf]
        %v246 = vld [vmem:[%s222 + $0x5c] sm:$0xf]
        %v247 = vld [vmem:[%s222 + $0x60] sm:$0xf]
        %v248 = vld [vmem:[%s222 + $0x64] sm:$0xf]
        %v249 = vld [vmem:[%s222 + $0x68] sm:$0xf]
        %v250 = vld [vmem:[%s222 + $0x6c] sm:$0xf]
        %v251 = vld [vmem:[%s222 + $0x70] sm:$0xf]
        %v252 = vld [vmem:[%s222 + $0x74] sm:$0xf]
        %v253 = vld [vmem:[%s222 + $0x78] sm:$0xf]
        %v254 = vld [vmem:[%s222 + $0x7c] sm:$0xf]
        %v255 = vmax.f32 %v223, %v231
        %v256 = vmax.f32 %v224, %v232
        %v257 = vmax.f32 %v225, %v233
        %v258 = vmax.f32 %v226, %v234
        %v259 = vmax.f32 %v227, %v235
        %v260 = vmax.f32 %v228, %v236
        %v261 = vmax.f32 %v229, %v237
        %v262 = vmax.f32 %v230, %v238
        %v263 = vmax.f32 %v239, %v247
        %v264 = vmax.f32 %v240, %v248
        %v265 = vmax.f32 %v241, %v249
        %v266 = vmax.f32 %v242, %v250
        %v267 = vmax.f32 %v243, %v251
        %v268 = vmax.f32 %v244, %v252
        %v269 = vmax.f32 %v245, %v253
        %v270 = vmax.f32 %v246, %v254
        %v271 = vmax.f32 %v255, %v263
        %v272 = vmax.f32 %v256, %v264
        %v273 = vmax.f32 %v257, %v265
        %v274 = vmax.f32 %v258, %v266
        %v275 = vmax.f32 %v259, %v267
        %v276 = vmax.f32 %v260, %v268
        %v277 = vmax.f32 %v261, %v269
        %v278 = vmax.f32 %v262, %v270
        %279 = vst [vmem:[#allocation2] sm:$0xff] 0.0
        %280 = vst [vmem:[#allocation2 + $0x8] sm:$0xff] 0.0
        %281 = vst [vmem:[#allocation3] sm:$0xff] 0.0
        %282 = vst [vmem:[#allocation3 + $0x8] sm:$0xff] 0.0
        %284 = vrot.lane.b32.xlu0 %v271, 17
        %v285 = vpop.permute.xlu0 %284
        %vm287 = vcmask 199816
        %288 = vst.msk [vmem:[#allocation2] sm:$0xf] %vm287, %v285
        %290 = vrot.lane.b32.xlu0 %v272, 33
        %v291 = vpop.permute.xlu0 %290
        %vm293 = vcmask 331016
        %294 = vst.msk [vmem:[#allocation2] sm:$0xf] %vm293, %v291
        %296 = vrot.lane.b32.xlu0 %v273, 49
        %v297 = vpop.permute.xlu0 %296
        %vm299 = vcmask 462216
        %300 = vst.msk [vmem:[#allocation2] sm:$0xf] %vm299, %v297
        %302 = vrot.lane.b32.xlu0 %v274, 65
        %v303 = vpop.permute.xlu0 %302
        %vm305 = vcmask 593416
        %306 = vst.msk [vmem:[#allocation2] sm:$0xf] %vm305, %v303
        %308 = vrot.lane.b32.xlu0 %v275, 81
        %v309 = vpop.permute.xlu0 %308
        %vm311 = vcmask 724616
        %312 = vst.msk [vmem:[#allocation2] sm:$0xf] %vm311, %v309
        %314 = vrot.lane.b32.xlu0 %v276, 97
        %v315 = vpop.permute.xlu0 %314
        %vm317 = vcmask 855816
        %318 = vst.msk [vmem:[#allocation2] sm:$0xf] %vm317, %v315
        %320 = vrot.lane.b32.xlu0 %v277, 113
        %v321 = vpop.permute.xlu0 %320
        %vm323 = vcmask 987016
        %324 = vst.msk [vmem:[#allocation2] sm:$0xf] %vm323, %v321
        %326 = vrot.lane.b32.xlu0 %v278, 1
        %v327 = vpop.permute.xlu0 %326
        %vm329 = vcmask 68616
        %330 = vst.msk [vmem:[#allocation2 + $0x8] sm:$0xf] %vm329, %v327
        %v331 = vld [vmem:[#allocation2] sm:$0xff]
        %332 = vst [vmem:[#allocation4] sm:$0xff] %v331
        %v333 = vld [vmem:[#allocation2] sm:$0xff]
        %v334 = vld [vmem:[#allocation2 + $0x8] sm:$0xff]
        %337 = vrot.lane.b32.xlu0 %v333, 127
        %v338 = vpop.permute.xlu0 %337
        %339 = vrot.lane.b32.xlu0 %v334, 127
        %v340 = vpop.permute.xlu0 %339
        %vm341 = vcmask 1039360
        %v342 = vsel %vm341, %v338, %v340
        %344 = vst [vmem:[#allocation4 + $0x8] sm:$0xff] %v342
        %v345 = vld [vmem:[#allocation2] sm:$0xff]
        %v346 = vld [vmem:[#allocation2 + $0x8] sm:$0xff]
        %349 = vrot.lane.b32.xlu0 %v345, 126
        %v350 = vpop.permute.xlu0 %349
        %351 = vrot.lane.b32.xlu0 %v346, 126
        %v352 = vpop.permute.xlu0 %351
        %vm353 = vcmask 1031168
        %v354 = vsel %vm353, %v350, %v352
        %356 = vst [vmem:[#allocation4 + $0x10] sm:$0xff] %v354
        %v357 = vld [vmem:[#allocation2] sm:$0xff]
        %v358 = vld [vmem:[#allocation2 + $0x8] sm:$0xff]
        %361 = vrot.lane.b32.xlu0 %v357, 112
        %v362 = vpop.permute.xlu0 %361
        %363 = vrot.lane.b32.xlu0 %v358, 112
        %v364 = vpop.permute.xlu0 %363
        %vm365 = vcmask 916480
        %v366 = vsel %vm365, %v362, %v364
        %368 = vst [vmem:[#allocation4 + $0x18] sm:$0xff] %v366
        %v369 = vld [vmem:[#allocation2] sm:$0xff]
        %v370 = vld [vmem:[#allocation2 + $0x8] sm:$0xff]
        %373 = vrot.lane.b32.xlu0 %v369, 111
        %v374 = vpop.permute.xlu0 %373
        %375 = vrot.lane.b32.xlu0 %v370, 111
        %v376 = vpop.permute.xlu0 %375
        %vm377 = vcmask 908288
        %v378 = vsel %vm377, %v374, %v376
        %380 = vst [vmem:[#allocation4 + $0x20] sm:$0xff] %v378
        %v381 = vld [vmem:[#allocation2] sm:$0xff]
        %v382 = vld [vmem:[#allocation2 + $0x8] sm:$0xff]
        %385 = vrot.lane.b32.xlu0 %v381, 110
        %v386 = vpop.permute.xlu0 %385
        %387 = vrot.lane.b32.xlu0 %v382, 110
        %v388 = vpop.permute.xlu0 %387
        %vm389 = vcmask 900096
        %v390 = vsel %vm389, %v386, %v388
        %392 = vst [vmem:[#allocation4 + $0x28] sm:$0xff] %v390
        %v393 = vld [vmem:[#allocation2] sm:$0xff]
        %v394 = vld [vmem:[#allocation2 + $0x8] sm:$0xff]
        %397 = vrot.lane.b32.xlu0 %v393, 96
        %v398 = vpop.permute.xlu0 %397
        %399 = vrot.lane.b32.xlu0 %v394, 96
        %v400 = vpop.permute.xlu0 %399
        %vm401 = vcmask 785408
        %v402 = vsel %vm401, %v398, %v400
        %404 = vst [vmem:[#allocation4 + $0x30] sm:$0xff] %v402
        %v405 = vld [vmem:[#allocation2] sm:$0xff]
        %v406 = vld [vmem:[#allocation2 + $0x8] sm:$0xff]
        %409 = vrot.lane.b32.xlu0 %v405, 95
        %v410 = vpop.permute.xlu0 %409
        %411 = vrot.lane.b32.xlu0 %v406, 95
        %v412 = vpop.permute.xlu0 %411
        %vm413 = vcmask 777216
        %v414 = vsel %vm413, %v410, %v412
        %416 = vst [vmem:[#allocation4 + $0x38] sm:$0xff] %v414
        %v417 = vld [vmem:[#allocation2] sm:$0xff]
        %v418 = vld [vmem:[#allocation2 + $0x8] sm:$0xff]
        %421 = vrot.lane.b32.xlu0 %v417, 94
        %v422 = vpop.permute.xlu0 %421
        %423 = vrot.lane.b32.xlu0 %v418, 94
        %v424 = vpop.permute.xlu0 %423
        %vm425 = vcmask 769024
        %v426 = vsel %vm425, %v422, %v424
        %428 = vst [vmem:[#allocation4 + $0x40] sm:$0xff] %v426
        %v429 = vld [vmem:[%s1] sm:$0xff]
        %v430 = vld [vmem:[#allocation4] sm:$0xff]
        %v431 = vld [vmem:[#allocation4 + $0x8] sm:$0xff]
        %v432 = vld [vmem:[#allocation4 + $0x10] sm:$0xff]
        %v433 = vld [vmem:[#allocation4 + $0x18] sm:$0xff]
        %v434 = vld [vmem:[#allocation4 + $0x20] sm:$0xff]
        %v435 = vld [vmem:[#allocation4 + $0x28] sm:$0xff]
        %v436 = vld [vmem:[#allocation4 + $0x30] sm:$0xff]
        %v437 = vld [vmem:[#allocation4 + $0x38] sm:$0xff]
        %v438 = vld [vmem:[#allocation4 + $0x40] sm:$0xff]
        %v439 = vlaneseq
        %v440 = vand.u32 %v439, 127
        %vm441 = vcmp.lt.s32.totalorder %v440, 0
        %v442 = vsub.s32 0, %v440
        %v443 = vsel %vm441, %v442, %v440
        %v444 = vshrl.u32 %v443, 4
        %v445 = vand.u32 %v443, 15
        %v446 = vsub.s32 0, %v445
        %v447 = vsel %vm441, %v446, %v445
        %vm448 = vcmp.ne.s32.totalorder %v447, 0
        %vm449 = vcmp.lt.s32.totalorder %v447, 0
        %vm450 = vmand %vm449, %vm448
        %v451 = vadd.s32 %v447, 16
        %v452 = vsel %vm450, %v451, %v447
        %vm453 = vcmp.lt.s32.totalorder %v452, 8
        %v454 = vsel %vm453, 1, 0
        %v455 = vcvt.s32.f32 %v454
        %v456 = vld [vmem:[%s2] sm:$0xff]
        %458 = vset.pattern.permute.xlu0 0
        %459 = vperm.xlu0 %458, %v456
        %v460 = vpop.permute.xlu0 %459
        %vm462 = vcmask 588800
        %v464 = vsel %vm462, %v429, 0
        %466 = vmatprep.subr.mxu0 0.0
        %467 = vmatpush1.msra.mxu0 0.0
        %468 = vmatprep.subr.mxu0 0.0
        %469 = vmatpush1.msra.mxu0 0.0
        %470 = vmatprep.subr.mxu0 0.0
        %471 = vmatpush1.msra.mxu0 0.0
        %472 = vmatprep.subr.mxu0 0.0
        %473 = vmatpush1.msra.mxu0 0.0
        %474 = vmatprep.subr.mxu0 0.0
        %475 = vmatpush1.msra.mxu0 0.0
        %476 = vmatprep.subr.mxu0 0.0
        %477 = vmatpush1.msra.mxu0 0.0
        %478 = vmatprep.subr.mxu0 0.0
        %479 = vmatpush1.msra.mxu0 0.0
        %480 = vmatprep.subr.mxu0 0.0
        %481 = vmatpush1.msra.mxu0 %v438
        %482 = vmatprep.subr.mxu0 0.0
        %483 = vmatpush1.msra.mxu0 %v437
        %484 = vmatprep.subr.mxu0 0.0
        %485 = vmatpush1.msra.mxu0 %v436
        %486 = vmatprep.subr.mxu0 0.0
        %487 = vmatpush1.msra.mxu0 %v435
        %488 = vmatprep.subr.mxu0 0.0
        %489 = vmatpush1.msra.mxu0 %v434
        %490 = vmatprep.subr.mxu0 0.0
        %491 = vmatpush1.msra.mxu0 %v433
        %492 = vmatprep.subr.mxu0 0.0
        %493 = vmatpush1.msra.mxu0 %v432
        %494 = vmatprep.subr.mxu0 0.0
        %495 = vmatpush1.msra.mxu0 %v431
        %496 = vmatprep.subr.mxu0 0.0
        %497 = vmatpush1.msra.mxu0 %v430
        %498 = vmatprep.subr.mxu0 0.0
        %499 = vmatpush2.msra.mxu0 0.0
        %500 = vmatprep.subr.mxu0 0.0
        %501 = vmatpush2.msra.mxu0 0.0
        %502 = vmatprep.subr.mxu0 0.0
        %503 = vmatpush2.msra.mxu0 0.0
        %504 = vmatprep.subr.mxu0 0.0
        %505 = vmatpush2.msra.mxu0 0.0
        %506 = vmatprep.subr.mxu0 0.0
        %507 = vmatpush2.msra.mxu0 0.0
        %508 = vmatprep.subr.mxu0 0.0
        %509 = vmatpush2.msra.mxu0 0.0
        %510 = vmatprep.subr.mxu0 0.0
        %511 = vmatpush2.msra.mxu0 0.0
        %512 = vmatprep.subr.mxu0 0.0
        %513 = vmatpush2.msra.mxu0 0.0
        %514 = vmatprep.subr.mxu0 0.0
        %515 = vmatpush2.msra.mxu0 0.0
        %516 = vmatprep.subr.mxu0 0.0
        %517 = vmatpush2.msra.mxu0 0.0
        %518 = vmatprep.subr.mxu0 0.0
        %519 = vmatpush2.msra.mxu0 0.0
        %520 = vmatprep.subr.mxu0 0.0
        %521 = vmatpush2.msra.mxu0 0.0
        %522 = vmatprep.subr.mxu0 0.0
        %523 = vmatpush2.msra.mxu0 0.0
        %524 = vmatprep.subr.mxu0 0.0
        %525 = vmatpush2.msra.mxu0 0.0
        %526 = vmatprep.subr.mxu0 0.0
        %527 = vmatpush2.msra.mxu0 0.0
        %528 = vmatprep.subr.mxu0 0.0
        %529 = vmatpush2.msra.mxu0 0.0
        %530 = vmatprep.mubr.f32.mxu0 0.0
        %531 = vmatmul.mubr.f32.gmra.mxu0 %v464
        %v532 = vpop.f32.mrf.mxu0
        %v533 = vadd.f32 %v460, %v532
        %v534 = vpop.f32.mrf.mxu0
        %535 = vdwg.mxu0
        %v536 = vmax.f32 %v533, 0.0
        %v537 = vmul.f32 %v536, %v455
        %539 = vrot.lane.b32.xlu0 %v537, 17
        %v540 = vpop.permute.xlu0 %539
        %vm542 = vcmask 1047688
        %543 = vst.msk [vmem:[#allocation3] sm:$0xff] %vm542, %v540
        %vm544 = vcmask 138240
        %545 = vst.msk [vmem:[#allocation3 + $0x8] sm:$0xff] %vm544, %v540
        %v546 = vld [vmem:[#allocation3] sm:$0xff]
        %547 = vst [vmem:[#allocation5] sm:$0xff] %v546
        %v548 = vld [vmem:[#allocation3] sm:$0xff]
        %v549 = vld [vmem:[#allocation3 + $0x8] sm:$0xff]
        %552 = vrot.lane.b32.xlu0 %v548, 127
        %v553 = vpop.permute.xlu0 %552
        %554 = vrot.lane.b32.xlu0 %v549, 127
        %v555 = vpop.permute.xlu0 %554
        %v556 = vsel %vm341, %v553, %v555
        %558 = vst [vmem:[#allocation5 + $0x8] sm:$0xff] %v556
        %v559 = vld [vmem:[#allocation3] sm:$0xff]
        %v560 = vld [vmem:[#allocation3 + $0x8] sm:$0xff]
        %563 = vrot.lane.b32.xlu0 %v559, 126
        %v564 = vpop.permute.xlu0 %563
        %565 = vrot.lane.b32.xlu0 %v560, 126
        %v566 = vpop.permute.xlu0 %565
        %v567 = vsel %vm353, %v564, %v566
        %569 = vst [vmem:[#allocation5 + $0x10] sm:$0xff] %v567
        %v570 = vld [vmem:[#allocation3] sm:$0xff]
        %v571 = vld [vmem:[#allocation3 + $0x8] sm:$0xff]
        %574 = vrot.lane.b32.xlu0 %v570, 112
        %v575 = vpop.permute.xlu0 %574
        %576 = vrot.lane.b32.xlu0 %v571, 112
        %v577 = vpop.permute.xlu0 %576
        %v578 = vsel %vm365, %v575, %v577
        %580 = vst [vmem:[#allocation5 + $0x18] sm:$0xff] %v578
        %v581 = vld [vmem:[#allocation3] sm:$0xff]
        %v582 = vld [vmem:[#allocation3 + $0x8] sm:$0xff]
        %585 = vrot.lane.b32.xlu0 %v581, 111
        %v586 = vpop.permute.xlu0 %585
        %587 = vrot.lane.b32.xlu0 %v582, 111
        %v588 = vpop.permute.xlu0 %587
        %v589 = vsel %vm377, %v586, %v588
        %591 = vst [vmem:[#allocation5 + $0x20] sm:$0xff] %v589
        %v592 = vld [vmem:[#allocation3] sm:$0xff]
        %v593 = vld [vmem:[#allocation3 + $0x8] sm:$0xff]
        %596 = vrot.lane.b32.xlu0 %v592, 110
        %v597 = vpop.permute.xlu0 %596
        %598 = vrot.lane.b32.xlu0 %v593, 110
        %v599 = vpop.permute.xlu0 %598
        %v600 = vsel %vm389, %v597, %v599
        %602 = vst [vmem:[#allocation5 + $0x28] sm:$0xff] %v600
        %v603 = vld [vmem:[#allocation3] sm:$0xff]
        %v604 = vld [vmem:[#allocation3 + $0x8] sm:$0xff]
        %607 = vrot.lane.b32.xlu0 %v603, 96
        %v608 = vpop.permute.xlu0 %607
        %609 = vrot.lane.b32.xlu0 %v604, 96
        %v610 = vpop.permute.xlu0 %609
        %v611 = vsel %vm401, %v608, %v610
        %613 = vst [vmem:[#allocation5 + $0x30] sm:$0xff] %v611
        %v614 = vld [vmem:[#allocation3] sm:$0xff]
        %v615 = vld [vmem:[#allocation3 + $0x8] sm:$0xff]
        %618 = vrot.lane.b32.xlu0 %v614, 95
        %v619 = vpop.permute.xlu0 %618
        %620 = vrot.lane.b32.xlu0 %v615, 95
        %v621 = vpop.permute.xlu0 %620
        %v622 = vsel %vm413, %v619, %v621
        %624 = vst [vmem:[#allocation5 + $0x38] sm:$0xff] %v622
        %v625 = vld [vmem:[#allocation3] sm:$0xff]
        %v626 = vld [vmem:[#allocation3 + $0x8] sm:$0xff]
        %629 = vrot.lane.b32.xlu0 %v625, 94
        %v630 = vpop.permute.xlu0 %629
        %631 = vrot.lane.b32.xlu0 %v626, 94
        %v632 = vpop.permute.xlu0 %631
        %v633 = vsel %vm425, %v630, %v632
        %635 = vst [vmem:[#allocation5 + $0x40] sm:$0xff] %v633
        %v636 = vld [vmem:[%s3] sm:$0xff]
        %v637 = vld [vmem:[#allocation5] sm:$0xff]
        %v638 = vld [vmem:[#allocation5 + $0x8] sm:$0xff]
        %v639 = vld [vmem:[#allocation5 + $0x10] sm:$0xff]
        %v640 = vld [vmem:[#allocation5 + $0x18] sm:$0xff]
        %v641 = vld [vmem:[#allocation5 + $0x20] sm:$0xff]
        %v642 = vld [vmem:[#allocation5 + $0x28] sm:$0xff]
        %v643 = vld [vmem:[#allocation5 + $0x30] sm:$0xff]
        %v644 = vld [vmem:[#allocation5 + $0x38] sm:$0xff]
        %v645 = vld [vmem:[#allocation5 + $0x40] sm:$0xff]
        %v646 = vld [vmem:[%s4] sm:$0xff]
        %648 = vset.pattern.permute.xlu0 0
        %649 = vperm.xlu0 %648, %v646
        %v650 = vpop.permute.xlu0 %649
        %v653 = vsel %vm462, %v636, 0
        %655 = vmatprep.subr.mxu0 0.0
        %656 = vmatpush1.msra.mxu0 0.0
        %657 = vmatprep.subr.mxu0 0.0
        %658 = vmatpush1.msra.mxu0 0.0
        %659 = vmatprep.subr.mxu0 0.0
        %660 = vmatpush1.msra.mxu0 0.0
        %661 = vmatprep.subr.mxu0 0.0
        %662 = vmatpush1.msra.mxu0 0.0
        %663 = vmatprep.subr.mxu0 0.0
        %664 = vmatpush1.msra.mxu0 0.0
        %665 = vmatprep.subr.mxu0 0.0
        %666 = vmatpush1.msra.mxu0 0.0
        %667 = vmatprep.subr.mxu0 0.0
        %668 = vmatpush1.msra.mxu0 0.0
        %669 = vmatprep.subr.mxu0 0.0
        %670 = vmatpush1.msra.mxu0 %v645
        %671 = vmatprep.subr.mxu0 0.0
        %672 = vmatpush1.msra.mxu0 %v644
        %673 = vmatprep.subr.mxu0 0.0
        %674 = vmatpush1.msra.mxu0 %v643
        %675 = vmatprep.subr.mxu0 0.0
        %676 = vmatpush1.msra.mxu0 %v642
        %677 = vmatprep.subr.mxu0 0.0
        %678 = vmatpush1.msra.mxu0 %v641
        %679 = vmatprep.subr.mxu0 0.0
        %680 = vmatpush1.msra.mxu0 %v640
        %681 = vmatprep.subr.mxu0 0.0
        %682 = vmatpush1.msra.mxu0 %v639
        %683 = vmatprep.subr.mxu0 0.0
        %684 = vmatpush1.msra.mxu0 %v638
        %685 = vmatprep.subr.mxu0 0.0
        %686 = vmatpush1.msra.mxu0 %v637
        %687 = vmatprep.subr.mxu0 0.0
        %688 = vmatpush2.msra.mxu0 0.0
        %689 = vmatprep.subr.mxu0 0.0
        %690 = vmatpush2.msra.mxu0 0.0
        %691 = vmatprep.subr.mxu0 0.0
        %692 = vmatpush2.msra.mxu0 0.0
        %693 = vmatprep.subr.mxu0 0.0
        %694 = vmatpush2.msra.mxu0 0.0
        %695 = vmatprep.subr.mxu0 0.0
        %696 = vmatpush2.msra.mxu0 0.0
        %697 = vmatprep.subr.mxu0 0.0
        %698 = vmatpush2.msra.mxu0 0.0
        %699 = vmatprep.subr.mxu0 0.0
        %700 = vmatpush2.msra.mxu0 0.0
        %701 = vmatprep.subr.mxu0 0.0
        %702 = vmatpush2.msra.mxu0 0.0
        %703 = vmatprep.subr.mxu0 0.0
        %704 = vmatpush2.msra.mxu0 0.0
        %705 = vmatprep.subr.mxu0 0.0
        %706 = vmatpush2.msra.mxu0 0.0
        %707 = vmatprep.subr.mxu0 0.0
        %708 = vmatpush2.msra.mxu0 0.0
        %709 = vmatprep.subr.mxu0 0.0
        %710 = vmatpush2.msra.mxu0 0.0
        %711 = vmatprep.subr.mxu0 0.0
        %712 = vmatpush2.msra.mxu0 0.0
        %713 = vmatprep.subr.mxu0 0.0
        %714 = vmatpush2.msra.mxu0 0.0
        %715 = vmatprep.subr.mxu0 0.0
        %716 = vmatpush2.msra.mxu0 0.0
        %717 = vmatprep.subr.mxu0 0.0
        %718 = vmatpush2.msra.mxu0 0.0
        %719 = vmatprep.mubr.f32.mxu0 0.0
        %720 = vmatmul.mubr.f32.gmra.mxu0 %v653
        %v721 = vpop.f32.mrf.mxu0
        %v722 = vadd.f32 %v650, %v721
        %v723 = vpop.f32.mrf.mxu0
        %724 = vdwg.mxu0
        %v725 = vmax.f32 %v722, 0.0
        %726 = vst [vmem:[%s217] sm:$0xff] %v725
        %s727 = sand.u32 %s137, 1
        %s728 = scalar_lea.sflag [#allocation7], %s727
        %s729 = sand.u32 %s137, 1
        %s730 = smul.addr %s729, 8
        %s731 = scalar_lea.vmem [#allocation6], %s730
        // Predicated region
        $region41: #{tpu_custom_call.1} parent=39 // pred_check
          %p732 = pneg %p147
        $region42: #{tpu_custom_call.1} parent=39 // pred_check_branch
          %734 = sbr.rel (%p732) target = $region44
        $region43: #{tpu_custom_call.1} parent=39 // pred_region
          %s736 = ssub.s32 128, 128
          %737 = vsyncadd %s728, %s736
          %s738 = smul.addr %s19, 128
          %s739 = scalar_lea.hbm %s5, %s738
          %s741 = sshll.u32 %s731, 4
          %s742 = int_to_ptr.vmem [resolvable:$true] %s741
          %744 = dma.vmem_to_hbm [thread:$0]  %s742, 128, %s739, %s728
        $region44: #{tpu_custom_call.1} parent=39 // pred_fallthru
          _
      $region40: #{tpu_custom_call.1} parent=5 // pred_fallthru
        _
      %p745 = scmp.le.s32.totalorder 2, %s14
      // Predicated region
      $region45: #{tpu_custom_call.1} parent=5 // pred_check
        %p746 = pneg %p745
      $region46: #{tpu_custom_call.1} parent=5 // pred_check_branch
        %748 = sbr.rel (%p746) target = $region48
      $region47: #{tpu_custom_call.1} parent=5 // pred_region
        %s749 = ssub.s32 %s14, 2
        // Predicated region
        $region49: #{tpu_custom_call.1} parent=47 // pred_check
          %p750 = pneg %p153
        $region50: #{tpu_custom_call.1} parent=47 // pred_check_branch
          %752 = sbr.rel (%p750) target = $region52
        $region51: #{tpu_custom_call.1} parent=47 // pred_region
          %s753 = sand.u32 %s138, 1
          %s754 = scalar_lea.sflag [#allocation7], %s753
          %s755 = sand.u32 %s138, 1
          %s756 = smul.addr %s755, 8
          %s757 = scalar_lea.vmem [#allocation6], %s756
          %758 = dma.done %s754, 128
        $region52: #{tpu_custom_call.1} parent=47 // pred_fallthru
          _
      $region48: #{tpu_custom_call.1} parent=5 // pred_fallthru
        _
    $region6: #{tpu_custom_call.1} parent=1 // loop_footer
      %s18 = sadd.s32 1, %s14
    $region7: #{tpu_custom_call.1} parent=1 // loop_footer_branch
      %13 = sbr.rel target = $region3
    $region8: #{tpu_custom_call.1} parent=1 // loop_exit
      _
    %759 = vsyncpa [#allocation7], 1
    %s760 = scalar_lea.sflag [#allocation7], 1
    %761 = vsyncpa %s760, 1

</llo_original>
